<compile_context>
chip_gen: v6e
topology: v6e:2x2x1
jax: 0.10.0
libtpu: 0.0.40
codegen_flags: <defaults>
</compile_context>

<pallas_src>
import jax
import jax.numpy as jnp
from jax.experimental import pallas as pl
from jax.experimental.pallas import tpu as pltpu


def _round_up(x, m):
    return ((x + m - 1) // m) * m


def _pad_to(a, shape):
    pads = [(0, s - d) for d, s in zip(a.shape, shape)]
    if any(p[1] for p in pads):
        a = jnp.pad(a, pads)
    return a


def _pick_tile(dim, preferred, align):
    """Tile size <= preferred (multiple of `align`).

    Prefers (a) the whole aligned dim when it fits, then (b) an exact divisor
    of the aligned dim (so no padding pass / output slice is needed), then
    (c) `preferred` with padding.
    """
    dim_al = _round_up(max(int(dim), 1), align)
    preferred = max(align, (int(preferred) // align) * align)
    if dim_al <= preferred:
        return dim_al
    t = preferred
    while t >= align:
        if dim_al % t == 0:
            if 2 * t > preferred:  # only accept divisors not much smaller than preferred
                return t
            break
        t -= align
    return preferred


def _vmem_capacity_bytes():
    """Per-core VMEM capacity; conservative 64 MiB (v7x) fallback."""
    try:
        cap = getattr(pltpu.get_tpu_info(), "vmem_capacity_bytes", None)
        if cap:
            return int(cap)
    except Exception:
        pass
    return 64 * 1024 * 1024


# --------------------------------------------------------------------------
# Kernels
# --------------------------------------------------------------------------
def _linear_resident_kernel(x_ref, w_ref, b_ref, o_ref):
    """Weight-resident path: full K/N per step, one MXU pass per row tile."""
    acc = jnp.dot(
        x_ref[...].astype(w_ref.dtype),  # in-kernel VPU cast (no extra HBM pass)
        w_ref[...],
        preferred_element_type=jnp.float32,
    )
    o_ref[...] = (acc + b_ref[...]).astype(o_ref.dtype)


def _linear_tiled_kernel(x_ref, w_ref, b_ref, o_ref, acc_ref):
    """Tiled path: one (bm, bn) output tile; K is the innermost grid axis."""
    k = pl.program_id(2)

    @pl.when(k == 0)
    def _():
        acc_ref[...] = jnp.zeros_like(acc_ref)

    acc_ref[...] += jnp.dot(
        x_ref[...].astype(w_ref.dtype),
        w_ref[...],
        preferred_element_type=jnp.float32,
    )

    @pl.when(k == pl.num_programs(2) - 1)
    def _():
        o_ref[...] = (acc_ref[...] + b_ref[...]).astype(o_ref.dtype)


# --------------------------------------------------------------------------
# Wrapper: TimeDistributed(Linear) forward
# --------------------------------------------------------------------------
def time_distributed_linear(x, w, b, *, compute_dtype=jnp.bfloat16, out_dtype=None):
    """TimeDistributed(Linear(D_in, D_out)) forward.

    x: (B, T, D_in)   w: (D_in, D_out)   b: (D_out,)
    returns (B, T, D_out) in out_dtype (defaults to x.dtype).
    """
    B, T, Din = x.shape
    Dout = w.shape[1]
    n = B * T
    out_dtype = x.dtype if out_dtype is None else out_dtype

    csz = jnp.dtype(compute_dtype).itemsize
    xsz = jnp.dtype(x.dtype).itemsize
    osz = jnp.dtype(out_dtype).itemsize

    # ---- per-generation VMEM budget (with headroom for compiler scratch) ----
    vmem_cap = _vmem_capacity_bytes()                       # 64 MiB v7x / 128 MiB v5e,v6e
    vmem_limit = int(max(32 * 1024 * 1024,
                         min(vmem_cap - 12 * 1024 * 1024, 112 * 1024 * 1024)))
    tile_budget = (3 * vmem_limit) // 4                     # keep ~25% slack

    # ---- TimeDistributed glue: flatten leading (B, T) dims ----
    xf = x.reshape(n, Din)
    wq = w.astype(compute_dtype)
    bq = b.astype(jnp.float32).reshape(1, Dout)

    w_bytes = Din * Dout * csz
    flops = 2 * n * Din * Dout

    # ---------------- weight-resident fast path ----------------
    use_resident = False
    bm_fast = 0
    if w_bytes <= vmem_limit // 4:
        fixed = 2 * w_bytes + 2 * Dout * 4                  # W (dbl-buffered) + bias
        bm_pref = 8192
        while bm_pref > 16 and fixed + 2 * bm_pref * (Din * xsz + Dout * osz) > tile_budget:
            bm_pref //= 2
        if fixed + 2 * bm_pref * (Din * xsz + Dout * osz) <= tile_budget:
            n_al = _round_up(n, 16)
            if n_al >= 512:  # keep >= 2 parallel row blocks for v7x megacore
                bm_pref = min(bm_pref, _round_up(-(-n_al // 2), 16))
            bm_fast = _pick_tile(n, bm_pref, 16)
            use_resident = True

    if use_resident:
        bm = bm_fast
        n_pad = _round_up(n, bm)
        xp = _pad_to(xf, (n_pad, Din))                      # no-op when bm divides n

        cost = pl.CostEstimate(
            flops=flops,
            transcendentals=0,
            bytes_accessed=n_pad * Din * xsz + w_bytes + n_pad * Dout * osz,
        )

        out = pl.pallas_call(
            _linear_resident_kernel,
            out_shape=jax.ShapeDtypeStruct((n_pad, Dout), out_dtype),
            grid_spec=pltpu.PrefetchScalarGridSpec(
                num_scalar_prefetch=0,
                grid=(n_pad // bm,),
                in_specs=[
                    pl.BlockSpec((bm, Din), lambda i: (i, 0)),     # x row tile (native dtype)
                    pl.BlockSpec((Din, Dout), lambda i: (0, 0)),   # W: resident, DMA'd once
                    pl.BlockSpec((1, Dout), lambda i: (0, 0)),     # bias (f32)
                ],
                out_specs=pl.BlockSpec((bm, Dout), lambda i: (i, 0)),
            ),
            compiler_params=pltpu.CompilerParams(
                dimension_semantics=("parallel",),
                vmem_limit_bytes=vmem_limit,
            ),
            cost_estimate=cost,
        )(xp, wq, bq)

        if n_pad != n:
            out = out[:n]
        return out.reshape(B, T, Dout)

    # ---------------- tiled general path (W does not fit VMEM) ----------------
    bk = _pick_tile(Din, 1024 if Din >= 1024 else 512, 128)

    bmn = 256
    for cand in (2048, 1792, 1536, 1280, 1024, 768, 512, 256):
        need = (2 * cand * bk * csz          # x tiles (double-buffered, bf16)
                + 2 * bk * cand * csz        # W tiles
                + 2 * cand * 4               # bias tile
                + 2 * cand * cand * osz      # output tiles
                + cand * cand * 4)           # f32 accumulator
        if need <= tile_budget:
            bmn = cand
            break

    bm = _pick_tile(n, bmn, 16)
    bn = _pick_tile(Dout, bmn, 128)

    n_pad = _round_up(n, bm)
    k_pad = _round_up(Din, bk)
    m_pad = _round_up(Dout, bn)
    num_n = m_pad // bn

    # Cast x in HBM only when each x tile is re-read >= 3 times; otherwise the
    # kernel casts the tile on the VPU (hidden under the MXU).
    x_in = xf.astype(compute_dtype) if (num_n >= 3 and x.dtype != compute_dtype) else xf
    x_isz = jnp.dtype(x_in.dtype).itemsize

    xp = _pad_to(x_in, (n_pad, k_pad))
    wp = _pad_to(wq, (k_pad, m_pad))
    bp = _pad_to(bq, (1, m_pad))

    cost = pl.CostEstimate(
        flops=flops,
        transcendentals=0,
        bytes_accessed=(n_pad * k_pad * x_isz * num_n
                        + k_pad * m_pad * csz * (n_pad // bm)
                        + n_pad * m_pad * osz),
    )

    out = pl.pallas_call(
        _linear_tiled_kernel,
        out_shape=jax.ShapeDtypeStruct((n_pad, m_pad), out_dtype),
        grid_spec=pltpu.PrefetchScalarGridSpec(
            num_scalar_prefetch=0,
            grid=(n_pad // bm, m_pad // bn, k_pad // bk),
            in_specs=[
                pl.BlockSpec((bm, bk), lambda i, j, k: (i, k)),   # x tile
                pl.BlockSpec((bk, bn), lambda i, j, k: (k, j)),   # W tile
                pl.BlockSpec((1, bn), lambda i, j, k: (0, j)),    # bias tile
            ],
            out_specs=pl.BlockSpec((bm, bn), lambda i, j, k: (i, j)),
            scratch_shapes=[pltpu.VMEM((bm, bn), jnp.float32)],
        ),
        compiler_params=pltpu.CompilerParams(
            dimension_semantics=("parallel", "parallel", "arbitrary"),
            vmem_limit_bytes=vmem_limit,
        ),
        cost_estimate=cost,
    )(xp, wp, bp)

    if n_pad != n or m_pad != Dout:
        out = out[:n, :Dout]
    return out.reshape(B, T, Dout)


if __name__ == "__main__":
    key = jax.random.PRNGKey(0)
    kx, kw, kb = jax.random.split(key, 3)

    B, T, D_in, D_out = 2, 8, 32, 64

    x = jax.random.normal(kx, (B, T, D_in), dtype=jnp.float32)
    # Deterministic parameter init (synthetic; matches nn.Linear shapes).
    w = jax.random.normal(kw, (D_in, D_out), dtype=jnp.float32) * 0.05
    b = jax.random.normal(kb, (D_out,), dtype=jnp.float32) * 0.05

    y = time_distributed_linear(x, w, b)
    jax.block_until_ready(y)

    # Reference: flatten -> linear -> reshape (exact TimeDistributed
    # semantics), using the same bf16 operands / f32 accumulation as the
    # kernel so tolerances stay tight.
    ref = (
        jnp.dot(
            x.reshape(-1, D_in).astype(jnp.bfloat16),
            w.astype(jnp.bfloat16),
            preferred_element_type=jnp.float32,
        )
        + b
    ).reshape(B, T, D_out).astype(x.dtype)

    assert y.shape == (B, T, D_out)
    assert jnp.allclose(y, ref, atol=2e-2, rtol=2e-2), float(
        jnp.max(jnp.abs(y - ref))
    )

    print("KERNEL_OK")
</pallas_src>

<mosaic_0001>
module attributes {stable_mosaic.version = 11 : i64} {
  func.func @_linear_resident_kernel(%arg0: i32, %arg1: memref<16x32xf32, #tpu.memory_space<vmem>>, %arg2: memref<32x64xbf16, #tpu.memory_space<vmem>>, %arg3: memref<1x64xf32, #tpu.memory_space<vmem>>, %arg4: memref<16x64xf32, #tpu.memory_space<vmem>>) attributes {dimension_semantics = [#tpu.dimension_semantics<parallel>], iteration_bounds = array<i64: 1>, scalar_prefetch = 0 : i64, scratch_operands = 0 : i64, tpu.core_type = #tpu.core_type<tc>, window_params = [{transform_indices = @transform_0, window_bounds = array<i64: 16, 32>}, {pipeline_mode = #tpu.pipeline_mode<synchronous>, transform_indices = @transform_1, window_bounds = array<i64: 32, 64>}, {pipeline_mode = #tpu.pipeline_mode<synchronous>, transform_indices = @transform_2, window_bounds = array<i64: 1, 64>}, {transform_indices = @transform_3, window_bounds = array<i64: 16, 64>}]} {
    %c0 = arith.constant 0 : index
    %c0_0 = arith.constant 0 : index
    %0 = vector.load %arg1[%c0, %c0_0] : memref<16x32xf32, #tpu.memory_space<vmem>>, vector<16x32xf32>
    %1 = arith.truncf %0 : vector<16x32xf32> to vector<16x32xbf16>
    %c0_1 = arith.constant 0 : index
    %c0_2 = arith.constant 0 : index
    %2 = vector.load %arg2[%c0_1, %c0_2] : memref<32x64xbf16, #tpu.memory_space<vmem>>, vector<32x64xbf16>
    %cst = arith.constant dense<0.000000e+00> : vector<16x64xf32>
    %3 = tpu.matmul %1, %2, %cst {dimension_numbers = #tpu.dot_dimension_numbers<[1], [0], [0], [1], [0, 0, 1, 1], [], []>} : vector<16x32xbf16>, vector<32x64xbf16>, vector<16x64xf32> -> vector<16x64xf32>
    %c0_3 = arith.constant 0 : index
    %c0_4 = arith.constant 0 : index
    %4 = vector.load %arg3[%c0_3, %c0_4] : memref<1x64xf32, #tpu.memory_space<vmem>>, vector<1x64xf32>
    %5 = vector.broadcast %4 : vector<1x64xf32> to vector<16x64xf32>
    %6 = arith.addf %3, %5 : vector<16x64xf32>
    %c0_5 = arith.constant 0 : index
    %c0_6 = arith.constant 0 : index
    %7 = vector.load %arg4[%c0_5, %c0_6] : memref<16x64xf32, #tpu.memory_space<vmem>>, vector<16x64xf32>
    tpu.vector_store %arg4[%c0_5, %c0_6], %6 {strides = array<i32>} : memref<16x64xf32, #tpu.memory_space<vmem>>, vector<16x64xf32>,
    return
  }
  func.func @transform_0(%arg0: i32) -> (i32, i32) {
    %c0_i32 = arith.constant 0 : i32
    %c0_i32_0 = arith.constant 0 : i32
    return %arg0, %c0_i32 : i32, i32
  }
  func.func @transform_1(%arg0: i32) -> (i32, i32) {
    %c0_i32 = arith.constant 0 : i32
    %c0_i32_0 = arith.constant 0 : i32
    %c0_i32_1 = arith.constant 0 : i32
    return %c0_i32, %c0_i32_0 : i32, i32
  }
  func.func @transform_2(%arg0: i32) -> (i32, i32) {
    %c0_i32 = arith.constant 0 : i32
    %c0_i32_0 = arith.constant 0 : i32
    %c0_i32_1 = arith.constant 0 : i32
    return %c0_i32, %c0_i32_0 : i32, i32
  }
  func.func @transform_3(%arg0: i32) -> (i32, i32) {
    %c0_i32 = arith.constant 0 : i32
    %c0_i32_0 = arith.constant 0 : i32
    return %arg0, %c0_i32 : i32, i32
  }
}

</mosaic_0001>

<llo_original>
// kernel: tpu_custom_call.1
$region0: #{tpu_custom_call.1}
  #allocation0 [shape = 'u32[]', space=smem, size = 0x4, offset = 0x4, fixed_abs, tag = 'smem constant byte address 0x4 - core index']
  #allocation1 [shape = 'u32[144,128]{1,0:T(1,128)}', space=vmem, size = 0x12000, scoped, tag = 'internal scratch']
  %s0 = inlined_call_operand.hbm [shape: f32[16,32], index: 0, kind: input, shape index: {}]
  %s1 = inlined_call_operand.hbm [shape: bf16[32,64], index: 1, kind: input, shape index: {}]
  %s2 = inlined_call_operand.vmem [shape: f32[1,64], index: 2, kind: input, shape index: {}]
  %s3 = inlined_call_operand.hbm [shape: f32[16,64], index: 3, kind: output, shape index: {}]
  %s4 = sld [smem:[#allocation0]]
  $region30: #{tpu_custom_call.1} parent=0
    _
  %s6 = ssub.s32 1, %s4
  %s7 = scalar_select 0, %s6, %s4
  $region1: #{tpu_custom_call.1} parent=0
    #allocation2 [shape = 'u8[8192]{0}', space=vmem, size = 0x2000, scoped, tag = 'input window, operand 0, single buffered']
    #allocation3 [shape = 's32[1]{0}', space=sflag, size = 0x4, scoped, tag = 'scoped memory for tpu_custom_call.1']
    #allocation4 [shape = 's32[1]{0}', space=sflag, size = 0x4, scoped, tag = 'scoped memory for tpu_custom_call.1']
    #allocation5 [shape = 'u8[8192]{0}', space=vmem, size = 0x2000, scoped, tag = 'input window, operand 1, single buffered']
    #allocation6 [shape = 's32[1]{0}', space=sflag, size = 0x4, scoped, tag = 'scoped memory for tpu_custom_call.1']
    #allocation7 [shape = 'u8[8192]{0}', space=vmem, size = 0x2000, scoped, tag = 'output window, operand 0, single buffered']
    %8 = vsyncpa [#allocation3], 0
    %9 = vsyncpa [#allocation6], 0
    %10 = vsyncpa [#allocation4], 0
    // Predicated region
    $region2: #{tpu_custom_call.1} parent=1 // pred_check
      _
    $region3: #{tpu_custom_call.1} parent=1 // pred_check_branch
      %12 = sbr.rel (0) target = $region5
    $region4: #{tpu_custom_call.1} parent=1 // pred_region
      %s14 = ssub.s32 256, 256
      %15 = vsyncadd [#allocation3], %s14
      %s16 = sshll.u32 [#allocation2], 4
      %s17 = int_to_ptr.vmem [resolvable:$true] %s16
      %22 = dma.hbm_to_vmem [thread:$0]  %s0, 256, %s17, [#allocation3], 128, 128, 8
    $region5: #{tpu_custom_call.1} parent=1 // pred_fallthru
      _
    // Predicated region
    $region6: #{tpu_custom_call.1} parent=1 // pred_check
      _
    $region7: #{tpu_custom_call.1} parent=1 // pred_check_branch
      %24 = sbr.rel (0) target = $region9
    $region8: #{tpu_custom_call.1} parent=1 // pred_region
      %s26 = ssub.s32 256, 256
      %27 = vsyncadd [#allocation6], %s26
      %s28 = sshll.u32 [#allocation5], 4
      %s29 = int_to_ptr.vmem [resolvable:$true] %s28
      %34 = dma.hbm_to_vmem [thread:$0]  %s1, 256, %s29, [#allocation6], 64, 64, 4
    $region9: #{tpu_custom_call.1} parent=1 // pred_fallthru
      _
    // Predicated region
    $region10: #{tpu_custom_call.1} parent=1 // pred_check
      _
    $region11: #{tpu_custom_call.1} parent=1 // pred_check_branch
      %36 = sbr.rel (0) target = $region13
    $region12: #{tpu_custom_call.1} parent=1 // pred_region
      _
    $region13: #{tpu_custom_call.1} parent=1 // pred_fallthru
      _
    // Predicated region
    $region14: #{tpu_custom_call.1} parent=1 // pred_check
      _
    $region15: #{tpu_custom_call.1} parent=1 // pred_check_branch
      %38 = sbr.rel (0) target = $region17
    $region16: #{tpu_custom_call.1} parent=1 // pred_region
      %39 = dma.done [#allocation3], 256
    $region17: #{tpu_custom_call.1} parent=1 // pred_fallthru
      _
    // Predicated region
    $region18: #{tpu_custom_call.1} parent=1 // pred_check
      _
    $region19: #{tpu_custom_call.1} parent=1 // pred_check_branch
      %41 = sbr.rel (0) target = $region21
    $region20: #{tpu_custom_call.1} parent=1 // pred_region
      %42 = dma.done [#allocation6], 256
    $region21: #{tpu_custom_call.1} parent=1 // pred_fallthru
      _
    %v44 = vld [vmem:[#allocation2] sm:$0xff]
    %v45 = vld [vmem:[#allocation2 + $0x8] sm:$0xff]
    %v46 = vpack.c.bf16 %v45, %v44
    %v47 = vld [vmem:[#allocation5] sm:$0xf]
    %v48 = vld [vmem:[#allocation5 + $0x4] sm:$0xf]
    %v49 = vld [vmem:[#allocation5 + $0x8] sm:$0xf]
    %v50 = vld [vmem:[#allocation5 + $0xc] sm:$0xf]
    %v51 = vld [vmem:[%s2] sm:$0x1]
    %v53 = vlaneseq
    %v54 = vshrl.u32 %v53, 7
    %v55 = vsub.s32 0, %v54
    %v56 = vrot.slane %v51, %v55
    %v62 = vunpack.c.l.b16 %v47
    %v63 = vunpack.c.l.b16 %v48
    %v64 = vunpack.c.l.b16 %v49
    %v65 = vunpack.c.l.b16 %v50
    %v66 = vpack.c.b16 %v63, %v62
    %v67 = vpack.c.b16 %v65, %v64
    %vm70 = vcmask 261120
    %v72 = vsel %vm70, %v46, 0
    %74 = vmatprep.subr.bf16.mxu0 0
    %75 = vmatpush1.bf16.msra.mxu0 0
    %76 = vmatprep.subr.bf16.mxu0 0
    %77 = vmatpush1.bf16.msra.mxu0 0
    %78 = vmatprep.subr.bf16.mxu0 0
    %79 = vmatpush1.bf16.msra.mxu0 0
    %80 = vmatprep.subr.bf16.mxu0 0
    %81 = vmatpush1.bf16.msra.mxu0 0
    %82 = vmatprep.subr.bf16.mxu0 0
    %83 = vmatpush1.bf16.msra.mxu0 0
    %84 = vmatprep.subr.bf16.mxu0 0
    %85 = vmatpush1.bf16.msra.mxu0 0
    %86 = vmatprep.subr.bf16.mxu0 0
    %87 = vmatpush1.bf16.msra.mxu0 %v67
    %88 = vmatprep.subr.bf16.mxu0 0
    %89 = vmatpush1.bf16.msra.mxu0 %v66
    %90 = vmatprep.subr.bf16.mxu0 0
    %91 = vmatpush2.bf16.msra.mxu0 0
    %92 = vmatprep.subr.bf16.mxu0 0
    %93 = vmatpush2.bf16.msra.mxu0 0
    %94 = vmatprep.subr.bf16.mxu0 0
    %95 = vmatpush2.bf16.msra.mxu0 0
    %96 = vmatprep.subr.bf16.mxu0 0
    %97 = vmatpush2.bf16.msra.mxu0 0
    %98 = vmatprep.subr.bf16.mxu0 0
    %99 = vmatpush2.bf16.msra.mxu0 0
    %100 = vmatprep.subr.bf16.mxu0 0
    %101 = vmatpush2.bf16.msra.mxu0 0
    %102 = vmatprep.subr.bf16.mxu0 0
    %103 = vmatpush2.bf16.msra.mxu0 0
    %104 = vmatprep.subr.bf16.mxu0 0
    %105 = vmatpush2.bf16.msra.mxu0 0
    %106 = vmatprep.mubr.bf16.mxu0 0
    %107 = vmatmul.mubr.bf16.gmra.mxu0 %v72
    %v108 = vpop.f32.mrf.mxu0
    %v109 = vadd.f32 %v56, %v108
    %v110 = vpop.f32.mrf.mxu0
    %v111 = vpop.f32.mrf.mxu0
    %v112 = vadd.f32 %v56, %v111
    %v113 = vpop.f32.mrf.mxu0
    %114 = vdwg.mxu0
    %vm115 = vcmask 523264
    %116 = vst.msk [vmem:[#allocation7] sm:$0xff] %vm115, %v109
    %117 = vst.msk [vmem:[#allocation7 + $0x8] sm:$0xff] %vm115, %v112
    // Predicated region
    $region22: #{tpu_custom_call.1} parent=1 // pred_check
      _
    $region23: #{tpu_custom_call.1} parent=1 // pred_check_branch
      %119 = sbr.rel (0) target = $region25
    $region24: #{tpu_custom_call.1} parent=1 // pred_region
      %s121 = ssub.s32 256, 256
      %122 = vsyncadd [#allocation4], %s121
      %s123 = sshll.u32 [#allocation7], 4
      %s124 = int_to_ptr.vmem [resolvable:$true] %s123
      %129 = dma.vmem_to_hbm [thread:$0]  %s124, 256, %s3, [#allocation4], 128, 128, 8
    $region25: #{tpu_custom_call.1} parent=1 // pred_fallthru
      _
    // Predicated region
    $region26: #{tpu_custom_call.1} parent=1 // pred_check
      _
    $region27: #{tpu_custom_call.1} parent=1 // pred_check_branch
      %131 = sbr.rel (0) target = $region29
    $region28: #{tpu_custom_call.1} parent=1 // pred_region
      %132 = dma.done [#allocation4], 256
    $region29: #{tpu_custom_call.1} parent=1 // pred_fallthru
      _
    %133 = vsyncpa [#allocation3], 1
    %134 = vsyncpa [#allocation6], 1
    %135 = vsyncpa [#allocation4], 1

</llo_original>
